<compile_context>
chip_gen: v5e
topology: v5e:2x2
jax: 0.10.0
libtpu: 0.0.40
codegen_flags: <defaults>
</compile_context>

<pallas_src>
import jax
import jax.numpy as jnp
from jax import lax
from jax.experimental import pallas as pl
from jax.experimental.pallas import tpu as pltpu


def _make_kernel(tile_h, wo, wo2, cout):
    """Fused (im2col-GEMM + folded BN/bias + ReLU + 3x3/2/1 max-pool) per tile."""
    th1 = tile_h + 1          # conv rows per tile incl. 1-row top halo
    ph = tile_h // 2          # pool rows produced per tile

    def kernel(p_ref, w_ref, b_ref, o_ref):
        # p_ref: (1, 1, th1*wo, K) bf16 im2col patches, conv columns stored
        #        [even | odd];  w_ref: (K, cout) bf16 (BN scale folded in);
        # b_ref: (1, cout) f32 folded bias;  o_ref: (1, ph, wo2, cout) f32.

        # Conv as one MXU GEMM: bf16 x bf16 -> f32 accumulation, single pass.
        y = jnp.dot(p_ref[0, 0], w_ref[...], preferred_element_type=jnp.float32)
        y = jnp.maximum(y + b_ref[...], 0.0)              # folded BN/bias + ReLU
        y3 = y.reshape(th1, wo, cout)                     # (rows, cols, C); wo % 8 == 0

        # ---- MaxPool2d(3, 2, 1), fused --------------------------------------
        # Row pass: pool row r uses local conv rows 2r, 2r+1, 2r+2.
        # Local row 0 is the halo (previous tile's last conv row; for tile 0 it
        # is a duplicate of conv row 0, which is equivalent to the top padding).
        yb = y3[1:].reshape(ph, 2, wo, cout)              # [:,0]=row 2r+1, [:,1]=row 2r+2
        mid, bot = yb[:, 0], yb[:, 1]
        top = jnp.concatenate([y3[0:1], bot[:-1]], axis=0)          # rows 2r
        rmax = jnp.maximum(jnp.maximum(top, mid), bot)               # (ph, wo, C)

        # Column pass: pool col j uses conv cols 2j-1, 2j, 2j+1.  Columns are
        # stored [even | odd], so this is two unit-stride slices + one shift.
        # Zero padding at j=0 is valid because the pool input is post-ReLU.
        even, odd = rmax[:, :wo2], rmax[:, wo2:]
        prev_odd = jnp.concatenate(
            [jnp.zeros((ph, 1, cout), rmax.dtype), odd[:, :-1]], axis=1)   # col 2j-1
        o_ref[0] = jnp.maximum(jnp.maximum(even, odd), prev_odd)

    return kernel


def _pick_tile_h(ho, requested=None):
    """Largest even divisor of ho that is <= requested (default target 16)."""
    t = min(requested or 16, ho)
    t = max(t - (t % 2), 2)
    while ho % t:
        t -= 2
    return t


def resnet_front_forward(x, conv_w, conv_b, bn_gamma, bn_beta, bn_mean, bn_var,
                         eps=1e-5, tile_h=None):
    """x: (N, 3, H, W) NCHW.  conv_w: (64, 3, 7, 7) OIHW.

    Returns Conv(7x7,s2,p3) + BN(eval) + ReLU + MaxPool(3,s2,p1) in NHWC layout
    (N, H//4, W//4, 64) -- the TPU-preferred layout (transpose outside if NCHW
    is required; same values as the PyTorch module).
    """
    n, cin, h, w = x.shape
    cout, _, kh, kw = conv_w.shape
    stride, pad = 2, 3
    ho = (h + 2 * pad - kh) // stride + 1
    wo = (w + 2 * pad - kw) // stride + 1
    assert ho % 2 == 0 and wo % 2 == 0, "kernel assumes even conv output size"
    ho2, wo2 = ho // 2, wo // 2
    k_dim = kh * kw * cin                               # 147

    th = _pick_tile_h(ho, tile_h)                       # conv rows per grid step
    n_tiles = ho // th
    ph, th1 = th // 2, th + 1

    # ---- plain-JAX glue: NHWC + zero pad + im2col patches (bf16) -------------
    x_nhwc = jnp.transpose(x, (0, 2, 3, 1)).astype(jnp.float32)
    x_p = jnp.pad(x_nhwc, ((0, 0), (pad, pad), (pad, pad), (0, 0)))
    pieces = [x_p[:, i:i + stride * ho:stride, j:j + stride * wo:stride, :]
              for i in range(kh) for j in range(kw)]
    patches = jnp.stack(pieces, axis=3).reshape(n, ho, wo, k_dim)
    # Conv columns reordered to [even | odd]: the pool's stride-2 column
    # subsample becomes a unit-stride slice inside the kernel.
    patches = jnp.concatenate([patches[:, :, 0::2], patches[:, :, 1::2]], axis=2)
    patches = patches.astype(jnp.bfloat16)
    # Top halo row per tile: duplicate conv row 0 for tile 0 (max(x0,x0,x1) ==
    # max(x0,x1), i.e. identical to the pool's top padding).
    p_halo = jnp.concatenate([patches[:, 0:1], patches], axis=1)    # (n, ho+1, wo, K)
    tiles = jnp.stack([p_halo[:, t * th:t * th + th1] for t in range(n_tiles)],
                      axis=1)                                       # (n, nt, th1, wo, K)
    tiles = tiles.reshape(n, n_tiles, th1 * wo, k_dim)

    # ---- fold conv bias + BatchNorm (inference) into the GEMM ----------------
    scale = bn_gamma / jnp.sqrt(bn_var + eps)
    w_fold = conv_w.astype(jnp.float32) * scale[:, None, None, None]
    b_fold = (conv_b - bn_mean) * scale + bn_beta
    w_mat = jnp.transpose(w_fold, (2, 3, 1, 0)).reshape(k_dim, cout)
    w_mat = w_mat.astype(jnp.bfloat16)                              # (K, cout)
    b_vec = b_fold.reshape(1, cout).astype(jnp.float32)

    out = pl.pallas_call(
        _make_kernel(th, wo, wo2, cout),
        out_shape=jax.ShapeDtypeStruct((n, ho2, wo2, cout), jnp.float32),
        grid=(n, n_tiles),
        in_specs=[
            pl.BlockSpec((1, 1, th1 * wo, k_dim), lambda b, t: (b, t, 0, 0)),
            pl.BlockSpec((k_dim, cout), lambda b, t: (0, 0)),   # resident weight
            pl.BlockSpec((1, cout), lambda b, t: (0, 0)),       # resident bias
        ],
        out_specs=pl.BlockSpec((1, ph, wo2, cout), lambda b, t: (b, t, 0, 0)),
        compiler_params=pltpu.CompilerParams(
            dimension_semantics=("parallel", "parallel"),
            vmem_limit_bytes=32 * 1024 * 1024),
    )(tiles, w_mat, b_vec)
    return out                                           # NHWC (n, ho2, wo2, cout)


if __name__ == "__main__":
    N, Cin, H, W = 2, 3, 16, 16
    Cout, K = 64, 7
    eps = 1e-5

    key = jax.random.PRNGKey(0)
    kx, kw_, kb, kg, kbe, km, kv = jax.random.split(key, 7)

    x = jax.random.normal(kx, (N, Cin, H, W), dtype=jnp.float32)
    bound = 1.0 / jnp.sqrt(jnp.float32(Cin * K * K))
    conv_w = jax.random.uniform(kw_, (Cout, Cin, K, K), jnp.float32, -bound, bound)
    conv_b = jax.random.uniform(kb, (Cout,), jnp.float32, -bound, bound)
    bn_gamma = jax.random.uniform(kg, (Cout,), jnp.float32, 0.5, 1.5)
    bn_beta = jax.random.uniform(kbe, (Cout,), jnp.float32, -0.5, 0.5)
    bn_mean = 0.1 * jax.random.normal(km, (Cout,), dtype=jnp.float32)
    bn_var = jax.random.uniform(kv, (Cout,), jnp.float32, 0.5, 1.5)

    # tile_h=4 -> 2 spatial tiles per image so the halo path is exercised.
    out = resnet_front_forward(x, conv_w, conv_b, bn_gamma, bn_beta,
                               bn_mean, bn_var, eps, tile_h=4)
    out = jax.block_until_ready(out)
    assert out.shape == (N, H // 4, W // 4, Cout)

    # ---- references (conv -> BN(eval) -> ReLU -> maxpool), compared in NHWC --
    def ref_forward(xf, wf, bf):
        conv = lax.conv_general_dilated(
            xf, wf, window_strides=(2, 2), padding=((3, 3), (3, 3)),
            dimension_numbers=("NCHW", "OIHW", "NCHW"),
            precision=lax.Precision.HIGHEST)
        act = jnp.maximum(conv + bf[None, :, None, None], 0.0)
        pooled = lax.reduce_window(act, -jnp.inf, lax.max,
                                   (1, 1, 3, 3), (1, 1, 2, 2),
                                   ((0, 0), (0, 0), (1, 1), (1, 1)))
        return jnp.transpose(pooled, (0, 2, 3, 1))       # -> NHWC

    scale = bn_gamma / jnp.sqrt(bn_var + eps)
    w_fold = conv_w * scale[:, None, None, None]
    b_fold = (conv_b - bn_mean) * scale + bn_beta

    # (1) exact-module f32 reference; loose tolerance since the kernel GEMM
    #     runs in bf16 (review: drop HIGHEST / use bf16 inputs).
    ref_f32 = ref_forward(x, w_fold, b_fold)
    assert jnp.allclose(out, ref_f32, atol=5e-2, rtol=5e-2)

    # (2) bf16-input-matched reference; tight tolerance (verifies im2col, halo,
    #     pooling and BN-fold logic exactly, modulo accumulation order).
    x_q = x.astype(jnp.bfloat16).astype(jnp.float32)
    w_q = w_fold.astype(jnp.bfloat16).astype(jnp.float32)
    ref_bf16 = ref_forward(x_q, w_q, b_fold)
    assert jnp.allclose(out, ref_bf16, atol=2e-3, rtol=2e-3)

    print("KERNEL_OK")
</pallas_src>

<mosaic_0001>
module attributes {stable_mosaic.version = 11 : i64} {
  func.func @kernel(%arg0: i32, %arg1: i32, %arg2: memref<1x1x40x147xbf16, #tpu.memory_space<vmem>>, %arg3: memref<147x64xbf16, #tpu.memory_space<vmem>>, %arg4: memref<1x64xf32, #tpu.memory_space<vmem>>, %arg5: memref<1x2x4x64xf32, #tpu.memory_space<vmem>>) attributes {dimension_semantics = [#tpu.dimension_semantics<parallel>, #tpu.dimension_semantics<parallel>], iteration_bounds = array<i64: 2, 2>, scalar_prefetch = 0 : i64, scratch_operands = 0 : i64, tpu.core_type = #tpu.core_type<tc>, window_params = [{transform_indices = @transform_0, window_bounds = array<i64: 1, 1, 40, 147>}, {pipeline_mode = #tpu.pipeline_mode<synchronous>, transform_indices = @transform_1, window_bounds = array<i64: 147, 64>}, {pipeline_mode = #tpu.pipeline_mode<synchronous>, transform_indices = @transform_2, window_bounds = array<i64: 1, 64>}, {transform_indices = @transform_3, window_bounds = array<i64: 1, 2, 4, 64>}]} {
    %c0 = arith.constant 0 : index
    %c0_0 = arith.constant 0 : index
    %c0_1 = arith.constant 0 : index
    %c0_2 = arith.constant 0 : index
    %0 = vector.load %arg2[%c0, %c0_0, %c0_1, %c0_2] : memref<1x1x40x147xbf16, #tpu.memory_space<vmem>>, vector<1x1x40x147xbf16>
    %1 = vector.shape_cast %0 : vector<1x1x40x147xbf16> to vector<40x147xbf16>
    %c0_3 = arith.constant 0 : index
    %c0_4 = arith.constant 0 : index
    %2 = vector.load %arg3[%c0_3, %c0_4] : memref<147x64xbf16, #tpu.memory_space<vmem>>, vector<147x64xbf16>
    %cst = arith.constant dense<0.000000e+00> : vector<40x64xf32>
    %3 = tpu.matmul %1, %2, %cst {dimension_numbers = #tpu.dot_dimension_numbers<[1], [0], [0], [1], [0, 0, 1, 1], [], []>} : vector<40x147xbf16>, vector<147x64xbf16>, vector<40x64xf32> -> vector<40x64xf32>
    %c0_5 = arith.constant 0 : index
    %c0_6 = arith.constant 0 : index
    %4 = vector.load %arg4[%c0_5, %c0_6] : memref<1x64xf32, #tpu.memory_space<vmem>>, vector<1x64xf32>
    %5 = vector.broadcast %4 : vector<1x64xf32> to vector<40x64xf32>
    %6 = arith.addf %3, %5 : vector<40x64xf32>
    %cst_7 = arith.constant 0.000000e+00 : f32
    %7 = vector.broadcast %cst_7 : f32 to vector<40x64xf32>
    %8 = arith.maximumf %6, %7 : vector<40x64xf32>
    %9 = vector.shape_cast %8 : vector<40x64xf32> to vector<5x8x64xf32>
    %10 = vector.extract_strided_slice %9 {offsets = [1, 0, 0], sizes = [4, 8, 64], strides = [1, 1, 1]} : vector<5x8x64xf32> to vector<4x8x64xf32>
    %11 = vector.shape_cast %10 : vector<4x8x64xf32> to vector<2x2x8x64xf32>
    %12 = vector.extract_strided_slice %11 {offsets = [0, 0, 0, 0], sizes = [2, 1, 8, 64], strides = [1, 1, 1, 1]} : vector<2x2x8x64xf32> to vector<2x1x8x64xf32>
    %13 = vector.shape_cast %12 : vector<2x1x8x64xf32> to vector<2x8x64xf32>
    %14 = vector.extract_strided_slice %11 {offsets = [0, 1, 0, 0], sizes = [2, 1, 8, 64], strides = [1, 1, 1, 1]} : vector<2x2x8x64xf32> to vector<2x1x8x64xf32>
    %15 = vector.shape_cast %14 : vector<2x1x8x64xf32> to vector<2x8x64xf32>
    %16 = vector.extract_strided_slice %9 {offsets = [0, 0, 0], sizes = [1, 8, 64], strides = [1, 1, 1]} : vector<5x8x64xf32> to vector<1x8x64xf32>
    %17 = vector.extract_strided_slice %15 {offsets = [0, 0, 0], sizes = [1, 8, 64], strides = [1, 1, 1]} : vector<2x8x64xf32> to vector<1x8x64xf32>
    %18 = tpu.concatenate %16, %17 in 0 : vector<1x8x64xf32>, vector<1x8x64xf32> -> vector<2x8x64xf32>
    %19 = arith.maximumf %18, %13 : vector<2x8x64xf32>
    %20 = arith.maximumf %19, %15 : vector<2x8x64xf32>
    %21 = vector.extract_strided_slice %20 {offsets = [0, 0, 0], sizes = [2, 4, 64], strides = [1, 1, 1]} : vector<2x8x64xf32> to vector<2x4x64xf32>
    %22 = vector.extract_strided_slice %20 {offsets = [0, 4, 0], sizes = [2, 4, 64], strides = [1, 1, 1]} : vector<2x8x64xf32> to vector<2x4x64xf32>
    %cst_8 = arith.constant 0.000000e+00 : f32
    %23 = vector.broadcast %cst_8 : f32 to vector<2x1x64xf32>
    %24 = vector.extract_strided_slice %22 {offsets = [0, 0, 0], sizes = [2, 3, 64], strides = [1, 1, 1]} : vector<2x4x64xf32> to vector<2x3x64xf32>
    %25 = tpu.concatenate %23, %24 in 1 : vector<2x1x64xf32>, vector<2x3x64xf32> -> vector<2x4x64xf32>
    %26 = arith.maximumf %21, %22 : vector<2x4x64xf32>
    %27 = arith.maximumf %26, %25 : vector<2x4x64xf32>
    %c0_9 = arith.constant 0 : index
    %c0_10 = arith.constant 0 : index
    %c0_11 = arith.constant 0 : index
    %c0_12 = arith.constant 0 : index
    %28 = vector.load %arg5[%c0_9, %c0_10, %c0_11, %c0_12] : memref<1x2x4x64xf32, #tpu.memory_space<vmem>>, vector<1x2x4x64xf32>
    %29 = vector.shape_cast %28 : vector<1x2x4x64xf32> to vector<2x4x64xf32>
    %30 = vector.shape_cast %27 : vector<2x4x64xf32> to vector<1x2x4x64xf32>
    tpu.vector_store %arg5[%c0_9, %c0_10, %c0_11, %c0_12], %30 {strides = array<i32>} : memref<1x2x4x64xf32, #tpu.memory_space<vmem>>, vector<1x2x4x64xf32>,
    return
  }
  func.func @transform_0(%arg0: i32, %arg1: i32) -> (i32, i32, i32, i32) {
    %c0_i32 = arith.constant 0 : i32
    %c0_i32_0 = arith.constant 0 : i32
    %c0_i32_1 = arith.constant 0 : i32
    return %arg0, %arg1, %c0_i32, %c0_i32_0 : i32, i32, i32, i32
  }
  func.func @transform_1(%arg0: i32, %arg1: i32) -> (i32, i32) {
    %c0_i32 = arith.constant 0 : i32
    %c0_i32_0 = arith.constant 0 : i32
    %c0_i32_1 = arith.constant 0 : i32
    return %c0_i32, %c0_i32_0 : i32, i32
  }
  func.func @transform_2(%arg0: i32, %arg1: i32) -> (i32, i32) {
    %c0_i32 = arith.constant 0 : i32
    %c0_i32_0 = arith.constant 0 : i32
    %c0_i32_1 = arith.constant 0 : i32
    return %c0_i32, %c0_i32_0 : i32, i32
  }
  func.func @transform_3(%arg0: i32, %arg1: i32) -> (i32, i32, i32, i32) {
    %c0_i32 = arith.constant 0 : i32
    %c0_i32_0 = arith.constant 0 : i32
    %c0_i32_1 = arith.constant 0 : i32
    return %arg0, %arg1, %c0_i32, %c0_i32_0 : i32, i32, i32, i32
  }
}

</mosaic_0001>

<llo_original>
// kernel: tpu_custom_call.1
$region0: #{tpu_custom_call.1}
  #allocation0 [shape = 'u32[]', space=smem, size = 0x4, offset = 0x4, fixed_abs, tag = 'smem constant byte address 0x4 - core index']
  #allocation1 [shape = 'u32[72,128]{1,0:T(1,128)}', space=vmem, size = 0x9000, scoped, tag = 'internal scratch']
  %s0 = inlined_call_operand.hbm [shape: bf16[2,2,40,147], index: 0, kind: input, shape index: {}]
  %s1 = inlined_call_operand.vmem [shape: bf16[147,64], index: 1, kind: input, shape index: {}]
  %s2 = inlined_call_operand.vmem [shape: f32[1,64], index: 2, kind: input, shape index: {}]
  %s3 = inlined_call_operand.hbm [shape: f32[2,4,4,64], index: 3, kind: output, shape index: {}]
  %s4 = sld [smem:[#allocation0]]
  $region49: #{tpu_custom_call.1} parent=0
    _
  %s6 = ssub.s32 1, %s4
  %s7 = scalar_select 0, %s6, %s4
  $region1: #{tpu_custom_call.1} parent=0
    #allocation2 [shape = 'u8[40960]{0}', space=vmem, size = 0xa000, scoped, tag = 'input window, operand 0']
    #allocation3 [shape = 's32[2]{0}', space=sflag, size = 0x8, scoped, tag = 'scoped memory for tpu_custom_call.1']
    #allocation4 [shape = 's32[2]{0}', space=sflag, size = 0x8, scoped, tag = 'scoped memory for tpu_custom_call.1']
    #allocation5 [shape = 'u8[8192]{0}', space=vmem, size = 0x2000, scoped, tag = 'output window, operand 0']
    %8 = vsyncpa [#allocation3], 0
    %s9 = scalar_lea.sflag [#allocation3], 1
    %10 = vsyncpa %s9, 0
    %11 = vsyncpa [#allocation4], 0
    %s12 = scalar_lea.sflag [#allocation4], 1
    %13 = vsyncpa %s12, 0
    loop: start=0, step=1, limit=6
    $region2: #{tpu_custom_call.1} parent=1 // loop_pre_header
      _
    $region3: #{tpu_custom_call.1} parent=1 // loop_header
      %s15 = sphi 0, %s19
      %p16 = scmp.ge.s32.totalorder %s15, 6
      %s22 = sphi 0, %s34
      %s23 = sphi 0, %s30
      %s24 = sphi 0, %s22
      %s25 = sphi 0, %s23
      %s26 = sphi 0, %s24
      %s27 = sphi 0, %s25
      %s39 = sphi 0, %s41
      %s42 = sphi 0, %s39
      %s43 = sphi 0, %s42
      %s59 = sphi 0, %s43
      %s63 = sphi 0, %s63
      %s65 = sphi 0, %s63
      %s66 = sphi 0, %s65
      %s80 = sphi 0, %s66
      %s84 = sphi 0, %s84
      %s86 = sphi 0, %s84
      %s87 = sphi 0, %s86
      %s101 = sphi 0, %s87
      %s109 = sphi 0, %s111
      %s112 = sphi 0, %s109
      %s113 = sphi 0, %s112
      %s129 = sphi 0, %s113
    $region4: #{tpu_custom_call.1} parent=1 // loop_header_branch
      %18 = sbr.rel (%p16) target = $region8
    $region5: #{tpu_custom_call.1} parent=1 // loop_body
      %s20 = ssub.s32 %s15, 1
      %s21 = ssub.s32 %s15, 2
      %s28 = sadd.s32 1, %s23
      %p29 = scmp.ge.s32.totalorder %s28, 2
      %s30 = scalar_select %p29, 0, %s28
      %s31 = sadd.s32 1, %s22
      %s32 = scalar_select %p29, %s31, %s22
      %p33 = scmp.ge.s32.totalorder %s32, 2
      %s34 = scalar_select %p33, 0, %s32
      %s35 = ssub.s32 %s22, %s34
      %s36 = ssub.s32 %s23, %s30
      %s37 = sor.u32 %s35, %s36
      %p38 = scmp.eq.s32.totalorder %s37, 0
      %s40 = sadd.s32 %s39, 1
      %s41 = scalar_select %p38, %s39, %s40
      %p44 = pneg %p38
      %p45 = scmp.eq.s32.totalorder %s15, 3
      %p46 = por %p44, %p45
      %p47 = scmp.ne.s32.totalorder %s39, %s42
      %p48 = scmp.eq.s32.totalorder %s15, 0
      %p49 = por %p47, %p48
      %p50 = scmp.ne.s32.totalorder %s39, %s42
      %p51 = scmp.eq.s32.totalorder %s20, 3
      %p52 = por %p50, %p51
      %p53 = scmp.ne.s32.totalorder %s42, %s43
      %p54 = scmp.eq.s32.totalorder %s20, 0
      %p55 = por %p53, %p54
      %p56 = scmp.ne.s32.totalorder %s42, %s43
      %p57 = scmp.eq.s32.totalorder %s21, 3
      %p58 = por %p56, %p57
      %p60 = scmp.ne.s32.totalorder %s43, %s59
      %p61 = scmp.eq.s32.totalorder %s21, 0
      %p62 = por %p60, %p61
      %s64 = sadd.s32 %s63, 1
      %p67 = scmp.eq.s32.totalorder %s15, 3
      %p68 = scmp.ne.s32.totalorder %s63, %s65
      %p69 = scmp.eq.s32.totalorder %s15, 0
      %p70 = por %p68, %p69
      %p71 = scmp.ne.s32.totalorder %s63, %s65
      %p72 = scmp.eq.s32.totalorder %s20, 3
      %p73 = por %p71, %p72
      %p74 = scmp.ne.s32.totalorder %s65, %s66
      %p75 = scmp.eq.s32.totalorder %s20, 0
      %p76 = por %p74, %p75
      %p77 = scmp.ne.s32.totalorder %s65, %s66
      %p78 = scmp.eq.s32.totalorder %s21, 3
      %p79 = por %p77, %p78
      %p81 = scmp.ne.s32.totalorder %s66, %s80
      %p82 = scmp.eq.s32.totalorder %s21, 0
      %p83 = por %p81, %p82
      %s85 = sadd.s32 %s84, 1
      %p88 = scmp.eq.s32.totalorder %s15, 3
      %p89 = scmp.ne.s32.totalorder %s84, %s86
      %p90 = scmp.eq.s32.totalorder %s15, 0
      %p91 = por %p89, %p90
      %p92 = scmp.ne.s32.totalorder %s84, %s86
      %p93 = scmp.eq.s32.totalorder %s20, 3
      %p94 = por %p92, %p93
      %p95 = scmp.ne.s32.totalorder %s86, %s87
      %p96 = scmp.eq.s32.totalorder %s20, 0
      %p97 = por %p95, %p96
      %p98 = scmp.ne.s32.totalorder %s86, %s87
      %p99 = scmp.eq.s32.totalorder %s21, 3
      %p100 = por %p98, %p99
      %p102 = scmp.ne.s32.totalorder %s87, %s101
      %p103 = scmp.eq.s32.totalorder %s21, 0
      %p104 = por %p102, %p103
      %s105 = ssub.s32 %s22, %s34
      %s106 = ssub.s32 %s23, %s30
      %s107 = sor.u32 %s105, %s106
      %p108 = scmp.eq.s32.totalorder %s107, 0
      %s110 = sadd.s32 %s109, 1
      %s111 = scalar_select %p108, %s109, %s110
      %p114 = pneg %p108
      %p115 = scmp.eq.s32.totalorder %s15, 3
      %p116 = por %p114, %p115
      %p117 = scmp.ne.s32.totalorder %s109, %s112
      %p118 = scmp.eq.s32.totalorder %s15, 0
      %p119 = por %p117, %p118
      %p120 = scmp.ne.s32.totalorder %s109, %s112
      %p121 = scmp.eq.s32.totalorder %s20, 3
      %p122 = por %p120, %p121
      %p123 = scmp.ne.s32.totalorder %s112, %s113
      %p124 = scmp.eq.s32.totalorder %s20, 0
      %p125 = por %p123, %p124
      %p126 = scmp.ne.s32.totalorder %s112, %s113
      %p127 = scmp.eq.s32.totalorder %s21, 3
      %p128 = por %p126, %p127
      %p130 = scmp.ne.s32.totalorder %s113, %s129
      %p131 = scmp.eq.s32.totalorder %s21, 0
      %p132 = por %p130, %p131
      %p133 = scmp.le.s32.totalorder 1, %s15
      %p134 = scmp.lt.s32.totalorder %s15, 5
      %p135 = pnand %p133, %p134
      %p136 = pneg %p135
      // Predicated region
      $region9: #{tpu_custom_call.1} parent=5 // pred_check
        _
      $region10: #{tpu_custom_call.1} parent=5 // pred_check_branch
        %138 = sbr.rel (%p135) target = $region12
      $region11: #{tpu_custom_call.1} parent=5 // pred_region
        %s139 = ssub.s32 %s15, 1
        // Predicated region
        $region13: #{tpu_custom_call.1} parent=11 // pred_check
          %p140 = pneg %p76
        $region14: #{tpu_custom_call.1} parent=11 // pred_check_branch
          %142 = sbr.rel (%p140) target = $region16
        $region15: #{tpu_custom_call.1} parent=11 // pred_region
          _
        $region16: #{tpu_custom_call.1} parent=11 // pred_fallthru
          _
        // Predicated region
        $region17: #{tpu_custom_call.1} parent=11 // pred_check
          %p143 = pneg %p97
        $region18: #{tpu_custom_call.1} parent=11 // pred_check_branch
          %145 = sbr.rel (%p143) target = $region20
        $region19: #{tpu_custom_call.1} parent=11 // pred_region
          _
        $region20: #{tpu_custom_call.1} parent=11 // pred_fallthru
          _
      $region12: #{tpu_custom_call.1} parent=5 // pred_fallthru
        _
      %p146 = scmp.lt.s32.totalorder %s15, 4
      // Predicated region
      $region21: #{tpu_custom_call.1} parent=5 // pred_check
        %p147 = pneg %p146
      $region22: #{tpu_custom_call.1} parent=5 // pred_check_branch
        %149 = sbr.rel (%p147) target = $region24
      $region23: #{tpu_custom_call.1} parent=5 // pred_region
        // Predicated region
        $region25: #{tpu_custom_call.1} parent=23 // pred_check
          %p150 = pneg %p49
        $region26: #{tpu_custom_call.1} parent=23 // pred_check_branch
          %152 = sbr.rel (%p150) target = $region28
        $region27: #{tpu_custom_call.1} parent=23 // pred_region
          %s153 = sand.u32 %s39, 1
          %s154 = scalar_lea.sflag [#allocation3], %s153
          %s155 = sand.u32 %s39, 1
          %s156 = smul.addr %s155, 40
          %s157 = scalar_lea.vmem [#allocation2], %s156
          %159 = vsyncadd %s154, 0
          %s160 = smul.addr %s23, 10
          %s161 = smul.addr %s22, 20
          %s162 = sadd.s32 %s160, %s161
          %s163 = smul.addr %s162, 4
          %s164 = scalar_lea.hbm %s0, %s163
          %s165 = sshll.u32 %s164, 4
          %s166 = int_to_ptr.hbm [resolvable:$true] %s165
          %s167 = sshll.u32 %s157, 4
          %s168 = int_to_ptr.vmem [resolvable:$true] %s167
          %173 = dma.hbm_to_vmem [thread:$0]  %s166, 640, %s168, %s154, 128, 128, 8
        $region28: #{tpu_custom_call.1} parent=23 // pred_fallthru
          _
      $region24: #{tpu_custom_call.1} parent=5 // pred_fallthru
        _
      %p174 = scmp.le.s32.totalorder 1, %s15
      %p175 = scmp.lt.s32.totalorder %s15, 5
      %p176 = pnand %p174, %p175
      %p177 = pneg %p176
      // Predicated region
      $region29: #{tpu_custom_call.1} parent=5 // pred_check
        _
      $region30: #{tpu_custom_call.1} parent=5 // pred_check_branch
        %179 = sbr.rel (%p176) target = $region32
      $region31: #{tpu_custom_call.1} parent=5 // pred_region
        %s180 = ssub.s32 %s15, 1
        %s181 = sand.u32 %s42, 1
        %s182 = scalar_lea.sflag [#allocation3], %s181
        %s183 = sand.u32 %s42, 1
        %s184 = smul.addr %s183, 40
        %s185 = scalar_lea.vmem [#allocation2], %s184
        // Predicated region
        $region33: #{tpu_custom_call.1} parent=31 // pred_check
          %p186 = pneg %p55
        $region34: #{tpu_custom_call.1} parent=31 // pred_check_branch
          %188 = sbr.rel (%p186) target = $region36
        $region35: #{tpu_custom_call.1} parent=31 // pred_region
          %190 = dma.done %s182, 640
        $region36: #{tpu_custom_call.1} parent=31 // pred_fallthru
          _
        %s191 = sand.u32 %s42, 1
        %s192 = scalar_lea.sflag [#allocation3], %s191
        %s193 = sand.u32 %s42, 1
        %s194 = smul.addr %s193, 40
        %s195 = scalar_lea.vmem [#allocation2], %s194
        %p196 = pneg %p55
        %p197 = pneg %p52
        %p198 = pneg %p76
        %p199 = pneg %p73
        %p200 = pneg %p97
        %p201 = pneg %p94
        %p202 = pneg %p125
        %p203 = pneg %p122
        %s204 = sand.u32 %s112, 1
        %s205 = scalar_lea.sflag [#allocation4], %s204
        %s206 = sand.u32 %s112, 1
        %s207 = smul.addr %s206, 8
        %s208 = scalar_lea.vmem [#allocation5], %s207
        %s209 = smul.u32 2, %s25
        %v211 = vld [vmem:[%s185] sm:$0xff]
        %v212 = vld [vmem:[%s185 + $0x8] sm:$0xff]
        %v213 = vld [vmem:[%s185 + $0x10] sm:$0xff]
        %v214 = vld [vmem:[%s185 + $0x18] sm:$0xff]
        %v215 = vld [vmem:[%s185 + $0x20] sm:$0xff]
        %v216 = vld [vmem:[%s1] sm:$0xf]
        %v217 = vld [vmem:[%s1 + $0x4] sm:$0xf]
        %v218 = vld [vmem:[%s1 + $0x8] sm:$0xf]
        %v219 = vld [vmem:[%s1 + $0xc] sm:$0xf]
        %v220 = vld [vmem:[%s1 + $0x10] sm:$0xf]
        %v221 = vld [vmem:[%s1 + $0x14] sm:$0xf]
        %v222 = vld [vmem:[%s1 + $0x18] sm:$0xf]
        %v223 = vld [vmem:[%s1 + $0x1c] sm:$0xf]
        %v224 = vld [vmem:[%s1 + $0x20] sm:$0xf]
        %v225 = vld [vmem:[%s1 + $0x24] sm:$0xf]
        %v226 = vld [vmem:[%s1 + $0x28] sm:$0xf]
        %v227 = vld [vmem:[%s1 + $0x2c] sm:$0xf]
        %v228 = vld [vmem:[%s1 + $0x30] sm:$0xf]
        %v229 = vld [vmem:[%s1 + $0x34] sm:$0xf]
        %v230 = vld [vmem:[%s1 + $0x38] sm:$0xf]
        %v231 = vld [vmem:[%s1 + $0x3c] sm:$0xf]
        %v232 = vld [vmem:[%s1 + $0x40] sm:$0xf]
        %v233 = vld [vmem:[%s1 + $0x44] sm:$0xf]
        %v234 = vld [vmem:[%s1 + $0x48] sm:$0x3]
        %v235 = vld [vmem:[%s2] sm:$0x1]
        %v237 = vperm.slane %v235, 0
        %v244 = vunpack.c.l.b16 %v211
        %v245 = vunpack.c.h.b16 %v211
        %v246 = vunpack.c.l.b16 %v212
        %v247 = vunpack.c.h.b16 %v212
        %v248 = vunpack.c.l.b16 %v213
        %v249 = vunpack.c.h.b16 %v213
        %v250 = vunpack.c.l.b16 %v214
        %v251 = vunpack.c.h.b16 %v214
        %v252 = vunpack.c.l.b16 %v215
        %v253 = vunpack.c.h.b16 %v215
        %v254 = vpack.c.b16 %v246, %v244
        %v255 = vpack.c.b16 %v247, %v245
        %v256 = vpack.c.b16 %v250, %v248
        %v257 = vpack.c.b16 %v251, %v249
        %v258 = vpack.c.b16 %v252, %v252
        %v259 = vpack.c.b16 %v253, %v253
        %v282 = vunpack.c.l.b16 %v216
        %v283 = vunpack.c.l.b16 %v217
        %v284 = vunpack.c.l.b16 %v218
        %v285 = vunpack.c.l.b16 %v219
        %v286 = vunpack.c.l.b16 %v220
        %v287 = vunpack.c.l.b16 %v221
        %v288 = vunpack.c.l.b16 %v222
        %v289 = vunpack.c.l.b16 %v223
        %v290 = vunpack.c.l.b16 %v224
        %v291 = vunpack.c.l.b16 %v225
        %v292 = vunpack.c.l.b16 %v226
        %v293 = vunpack.c.l.b16 %v227
        %v294 = vunpack.c.l.b16 %v228
        %v295 = vunpack.c.l.b16 %v229
        %v296 = vunpack.c.l.b16 %v230
        %v297 = vunpack.c.l.b16 %v231
        %v298 = vunpack.c.l.b16 %v232
        %v299 = vunpack.c.l.b16 %v233
        %v300 = vunpack.c.l.b16 %v234
        %v301 = vpack.c.b16 %v283, %v282
        %v302 = vpack.c.b16 %v285, %v284
        %v303 = vpack.c.b16 %v287, %v286
        %v304 = vpack.c.b16 %v289, %v288
        %v305 = vpack.c.b16 %v291, %v290
        %v306 = vpack.c.b16 %v293, %v292
        %v307 = vpack.c.b16 %v295, %v294
        %v308 = vpack.c.b16 %v297, %v296
        %v309 = vpack.c.b16 %v299, %v298
        %v310 = vpack.c.b16 %v300, %v300
        %vm320 = vcmask 154624
        %v322 = vsel %vm320, %v255, 0
        %v325 = vsel %vm320, %v257, 0
        %v328 = vsel %vm320, %v259, 0
        %vm330 = vcmask 1040384
        %vm331 = vcmask 1041408
        %v332 = vsel %vm330, 4294967295, 65535
        %v333 = vsel %vm331, %v332, 0
        %v335 = vand.u32 %v310, %v333
        %337 = vmatpush.bf16.msra.mxu0 %v308
        %338 = vmatpush.bf16.msra.mxu0 %v307
        %339 = vmatpush.bf16.msra.mxu0 %v306
        %340 = vmatpush.bf16.msra.mxu0 %v305
        %341 = vmatpush.bf16.msra.mxu0 %v304
        %342 = vmatpush.bf16.msra.mxu0 %v303
        %343 = vmatpush.bf16.msra.mxu0 %v302
        %344 = vmatpush.bf16.msra.mxu0 %v301
        %345 = vmatmul.bf16.gmra.mxu0 %v254
        %v346 = vpop.f32.mrf.mxu0
        %v347 = vadd.f32 %v237, %v346
        %v348 = vpop.f32.mrf.mxu0
        %v349 = vadd.f32 %v237, %v348
        %350 = vmatmul.bf16.gmra.mxu0 %v256
        %v351 = vpop.f32.mrf.mxu0
        %v352 = vadd.f32 %v237, %v351
        %v353 = vpop.f32.mrf.mxu0
        %v354 = vadd.f32 %v237, %v353
        %355 = vmatmul.bf16.gmra.mxu0 %v258
        %v356 = vpop.f32.mrf.mxu0
        %v357 = vadd.f32 %v237, %v356
        %v358 = vpop.f32.mrf.mxu0
        %359 = vdwg.mxu0
        %360 = vmatpush.bf16.msra.mxu0 0
        %361 = vmatpush.bf16.msra.mxu0 0
        %362 = vmatpush.bf16.msra.mxu0 0
        %363 = vmatpush.bf16.msra.mxu0 0
        %364 = vmatpush.bf16.msra.mxu0 0
        %365 = vmatpush.bf16.msra.mxu0 0
        %366 = vmatpush.bf16.msra.mxu0 %v335
        %367 = vmatpush.bf16.msra.mxu0 %v309
        %368 = vmatmul.bf16.gmra.mxu0 %v322
        %v369 = vpop.f32.mrf.mxu0
        %v370 = vadd.f32 %v347, %v369
        %v371 = vpop.f32.mrf.mxu0
        %v372 = vadd.f32 %v349, %v371
        %373 = vmatmul.bf16.gmra.mxu0 %v325
        %v374 = vpop.f32.mrf.mxu0
        %v375 = vadd.f32 %v352, %v374
        %v376 = vpop.f32.mrf.mxu0
        %v377 = vadd.f32 %v354, %v376
        %378 = vmatmul.bf16.gmra.mxu0 %v328
        %v379 = vpop.f32.mrf.mxu0
        %v380 = vadd.f32 %v357, %v379
        %v381 = vpop.f32.mrf.mxu0
        %382 = vdwg.mxu0
        %v383 = vmax.f32 %v370, 0.0
        %v384 = vmax.f32 %v372, 0.0
        %v385 = vmax.f32 %v375, 0.0
        %v386 = vmax.f32 %v377, 0.0
        %v387 = vmax.f32 %v380, 0.0
        %v388 = vmax.f32 %v383, %v384
        %v389 = vmax.f32 %v385, %v386
        %v390 = vmax.f32 %v388, %v385
        %v391 = vmax.f32 %v389, %v387
        %v394 = vrot.slane %v390, 3
        %v395 = vrot.slane %v391, 3
        %v398 = vsel %vm330, 0.0, %v394
        %v399 = vsel %vm330, 0.0, %v395
        %v400 = vrot.slane %v390, 4
        %v401 = vrot.slane %v391, 4
        %v404 = vmax.f32 %v390, %v400
        %v405 = vmax.f32 %v391, %v401
        %v406 = vmax.f32 %v404, %v398
        %v407 = vmax.f32 %v405, %v399
        %vm408 = vcmask 519168
        %409 = vst.msk [vmem:[%s208] sm:$0xf] %vm408, %v406
        %410 = vst.msk [vmem:[%s208 + $0x4] sm:$0xf] %vm408, %v407
        %s411 = sand.u32 %s112, 1
        %s412 = scalar_lea.sflag [#allocation4], %s411
        %s413 = sand.u32 %s112, 1
        %s414 = smul.addr %s413, 8
        %s415 = scalar_lea.vmem [#allocation5], %s414
        // Predicated region
        $region37: #{tpu_custom_call.1} parent=31 // pred_check
          %p416 = pneg %p122
        $region38: #{tpu_custom_call.1} parent=31 // pred_check_branch
          %418 = sbr.rel (%p416) target = $region40
        $region39: #{tpu_custom_call.1} parent=31 // pred_region
          %s419 = smul.u32 2, %s25
          %421 = vsyncadd %s412, 0
          %s422 = smul.addr %s24, 4
          %s423 = sadd.s32 %s419, %s422
          %s424 = smul.addr %s423, 4
          %s425 = scalar_lea.hbm %s3, %s424
          %s426 = sshll.u32 %s415, 4
          %s427 = int_to_ptr.vmem [resolvable:$true] %s426
          %s428 = sshll.u32 %s425, 4
          %s429 = int_to_ptr.hbm [resolvable:$true] %s428
          %434 = dma.vmem_to_hbm [thread:$0]  %s427, 128, %s429, %s412, 64, 64, 4
        $region40: #{tpu_custom_call.1} parent=31 // pred_fallthru
          _
      $region32: #{tpu_custom_call.1} parent=5 // pred_fallthru
        _
      %p435 = scmp.le.s32.totalorder 2, %s15
      // Predicated region
      $region41: #{tpu_custom_call.1} parent=5 // pred_check
        %p436 = pneg %p435
      $region42: #{tpu_custom_call.1} parent=5 // pred_check_branch
        %438 = sbr.rel (%p436) target = $region44
      $region43: #{tpu_custom_call.1} parent=5 // pred_region
        %s439 = ssub.s32 %s15, 2
        // Predicated region
        $region45: #{tpu_custom_call.1} parent=43 // pred_check
          %p440 = pneg %p128
        $region46: #{tpu_custom_call.1} parent=43 // pred_check_branch
          %442 = sbr.rel (%p440) target = $region48
        $region47: #{tpu_custom_call.1} parent=43 // pred_region
          %s443 = sand.u32 %s113, 1
          %s444 = scalar_lea.sflag [#allocation4], %s443
          %s445 = sand.u32 %s113, 1
          %s446 = smul.addr %s445, 8
          %s447 = scalar_lea.vmem [#allocation5], %s446
          %449 = dma.done %s444, 128
        $region48: #{tpu_custom_call.1} parent=43 // pred_fallthru
          _
      $region44: #{tpu_custom_call.1} parent=5 // pred_fallthru
        _
    $region6: #{tpu_custom_call.1} parent=1 // loop_footer
      %s19 = sadd.s32 1, %s15
    $region7: #{tpu_custom_call.1} parent=1 // loop_footer_branch
      %14 = sbr.rel target = $region3
    $region8: #{tpu_custom_call.1} parent=1 // loop_exit
      _
    %450 = vsyncpa [#allocation3], 1
    %s451 = scalar_lea.sflag [#allocation3], 1
    %452 = vsyncpa %s451, 1
    %453 = vsyncpa [#allocation4], 1
    %s454 = scalar_lea.sflag [#allocation4], 1
    %455 = vsyncpa %s454, 1

</llo_original>
